<compile_context>
chip_gen: v6e
topology: v6e:2x2x1
jax: 0.10.0
libtpu: 0.0.40
codegen_flags: <defaults>
</compile_context>

<pallas_src>
import jax
import jax.numpy as jnp
from jax import lax
from jax.experimental import pallas as pl
from jax.experimental.pallas import tpu as pltpu


# --------------------------------------------------------------------------- helpers
def _cdiv(a: int, b: int) -> int:
    return (a + b - 1) // b


def _ceil_to(x: int, m: int) -> int:
    return _cdiv(x, m) * m


_PACK_ALIGN = {4: 8, 2: 16, 1: 32}   # sublane packing per itemsize


def _padded_bytes(rows: int, cols: int, itemsize: int) -> int:
    """VMEM footprint of a (rows, cols) array after (sublane, lane) tiling."""
    sub = _PACK_ALIGN.get(itemsize, 8)
    return _ceil_to(max(rows, 1), sub) * _ceil_to(max(cols, 1), 128) * itemsize


def _vmem_cap_bytes() -> int:
    """Conservative scoped-VMEM budget for the current chip generation."""
    try:
        phys = int(pltpu.get_tpu_info().vmem_capacity_bytes)
    except Exception:                       # query unavailable -> assume v7x (smallest)
        phys = 64 * 1024 * 1024
    # >= 25% headroom for Mosaic internal scratch; never assume > 96 MiB even on
    # 128 MiB parts (v5e/v6e); 48 MiB on v7x's 64 MiB per-TensorCore VMEM.
    return max(16 * 1024 * 1024, min((phys * 3) // 4, 96 * 1024 * 1024))


# --------------------------------------------------------------------------- kernel
def _mlp_kernel(x_ref, w1_ref, b1_ref, w2_ref, b2_ref, w3r_ref, b3_ref, o_ref):
    """Fused Linear->ReLU->Linear->ReLU->Linear for one batch tile.

    x_ref   : (tile, in_dim)    input dtype (cast to compute dtype on-chip)
    w1_ref  : (in_dim, hidden)  compute dtype (VMEM-resident across grid steps)
    b1_ref  : (1, hidden)       f32
    w2_ref  : (hidden, hidden)  compute dtype
    b2_ref  : (1, hidden)       f32
    w3r_ref : (1, hidden)       compute dtype (last layer's weight as a row vector)
    b3_ref  : (1,)              f32 (SMEM scalar)
    o_ref   : (1, 1, tile)      f32 lane-dense logits (batch on the lane axis)
    """
    cdt = w1_ref.dtype
    x = x_ref[...].astype(cdt)
    # Layer 1: MXU matmul, f32 accumulation; bias/ReLU in f32 on the VPU.
    h1 = jnp.dot(x, w1_ref[...], preferred_element_type=jnp.float32) + b1_ref[...]
    h1 = jnp.maximum(h1, 0.0).astype(cdt)
    # Layer 2.
    h2 = jnp.dot(h1, w2_ref[...], preferred_element_type=jnp.float32) + b2_ref[...]
    h2 = jnp.maximum(h2, 0.0).astype(cdt)          # cast once: halves layer-3 traffic
    # Layer 3 (hidden -> 1): contract hidden-with-hidden so logits come out (1, tile)
    # with batch on lanes -> unmasked lane-dense stores (no (tile, 1) vst.msk path).
    d = lax.dot_general(w3r_ref[...], h2,
                        dimension_numbers=(((1,), (1,)), ((), ())),
                        preferred_element_type=jnp.float32)        # (1, tile)
    o_ref[...] = (d + b3_ref[0])[None].astype(o_ref.dtype)          # (1, 1, tile)


# --------------------------------------------------------------------------- wrapper
def prepare_params(params, compute_dtype=jnp.bfloat16):
    """Cast/reshape weights ONCE (hoists per-call HBM weight copies out of hot loops)."""
    w1, b1, w2, b2, w3, b3 = params
    cdt = jnp.dtype(compute_dtype)
    hidden = w1.shape[1]
    return (jnp.asarray(w1, cdt),
            jnp.reshape(jnp.asarray(b1, jnp.float32), (1, hidden)),
            jnp.asarray(w2, cdt),
            jnp.reshape(jnp.asarray(b2, jnp.float32), (1, hidden)),
            jnp.reshape(jnp.asarray(w3, cdt), (1, hidden)),
            jnp.reshape(jnp.asarray(b3, jnp.float32), (1,)))


def _is_prepared(params, compute_dtype) -> bool:
    w1, b1, w2, b2, w3, b3 = params
    cdt = jnp.dtype(compute_dtype)
    hidden = w1.shape[1]
    return (w1.dtype == cdt and w2.dtype == cdt
            and w3.shape == (1, hidden) and w3.dtype == cdt
            and b1.shape == (1, hidden) and b1.dtype == jnp.float32
            and b2.shape == (1, hidden) and b2.dtype == jnp.float32
            and b3.shape == (1,) and b3.dtype == jnp.float32)


def discriminator_forward(transition, params, *, batch_tile=None,
                          compute_dtype=jnp.bfloat16):
    """Discriminator.forward (dist=None branch): returns logits of shape [B, 1].

    `params` is either the raw (w1, b1, w2, b2, w3, b3) tuple (weights stored
    [in, out] so the kernel computes x @ W + b, i.e. torch's x @ W.T + b) or,
    preferably when called in a loop, the output of prepare_params().
    """
    compute_dtype = jnp.dtype(compute_dtype)
    if not _is_prepared(params, compute_dtype):
        params = prepare_params(params, compute_dtype)
    w1c, b1f, w2c, b2f, w3r, b3s = params

    B, in_dim = transition.shape
    hidden = w1c.shape[1]
    x_item = jnp.dtype(transition.dtype).itemsize
    w_item = compute_dtype.itemsize

    # ---- shape-aware batch-tile selection (VMEM-budget driven) ----------------
    cap = _vmem_cap_bytes()
    # Per-row VMEM (lane-padded): x (<=3 buffers), lane-dense out (2 buffers),
    # f32 h1/h2/layer-3 temporaries.
    row_bytes = (3 * _ceil_to(in_dim, 128) * x_item
                 + 2 * 8 * 4
                 + 3 * _ceil_to(hidden, 128) * 4)
    # Single-buffered resident weights/biases + slack for compiler scratch.
    fixed_bytes = (_padded_bytes(in_dim, hidden, w_item)
                   + _padded_bytes(hidden, hidden, w_item)
                   + 3 * _padded_bytes(1, hidden, 4) + 4
                   + 2 * 1024 * 1024)
    sub_align = max(_PACK_ALIGN.get(x_item, 8), _PACK_ALIGN.get(w_item, 8))
    tile_budget = max(sub_align, (cap - fixed_bytes) // row_bytes)

    # 128-row alignment whenever B allows (keeps the (1,1,tile) output slab lane
    # dense with unmasked stores); otherwise just the sublane/packing alignment.
    unit = 128 if B >= 128 else sub_align
    want = int(batch_tile) if batch_tile is not None else min(8192, tile_budget)
    want = max(unit, min(want, tile_budget, _ceil_to(B, unit)))
    want = _ceil_to(want, unit)

    # Prefer an EVEN number of grid steps so v7x's two TensorCores get a balanced
    # split of the "parallel" axis.
    nt = _cdiv(B, want)
    if nt > 1 and nt % 2 == 1:
        nt += 1
    tile = max(unit, _ceil_to(_cdiv(B, nt), unit))

    # Prefer a tile that divides B exactly: avoids the wrapper-side jnp.pad of x
    # (a full extra HBM write+read of the dominant input traffic).
    if B % tile != 0:
        for cand in range(tile, unit - 1, -unit):
            if B % cand == 0 and 2 * cand >= tile:
                tile = cand
                break

    def _est(t):
        xb = 3 if (t * _ceil_to(in_dim, 128) * x_item) < (1 << 18) else 2
        est = (xb * _padded_bytes(t, in_dim, x_item)
               + 2 * _padded_bytes(1, t, 4)
               + 3 * _padded_bytes(t, hidden, 4)
               + fixed_bytes)
        return xb, est

    x_bufs, vmem_est = _est(tile)
    # If the estimate exceeds the budget (very large hidden), shrink the TILE
    # rather than clamping the limit below the real requirement.
    while vmem_est > cap and tile > unit:
        tile = max(unit, _ceil_to(_cdiv(tile, 2), unit))
        x_bufs, vmem_est = _est(tile)

    num_tiles = _cdiv(B, tile)
    B_pad = num_tiles * tile

    # ---- operands --------------------------------------------------------------
    x = transition
    if B_pad != B:
        x = jnp.pad(x, ((0, B_pad - B), (0, 0)))   # padded rows are sliced off below

    flops = 2 * B_pad * (in_dim * hidden + hidden * hidden + hidden)
    bytes_accessed = (B_pad * in_dim * x_item + B_pad * 4
                      + (in_dim * hidden + hidden * hidden) * w_item
                      + (3 * hidden + 1) * 4)
    cost = pl.CostEstimate(flops=int(flops), transcendentals=0,
                           bytes_accessed=int(bytes_accessed))
    # Always set the scoped-VMEM limit explicitly (v5e defaults to 16 MiB).
    vmem_limit = int(min(cap, max(vmem_est * 5 // 4, 20 * 1024 * 1024)))

    def _run(use_pipeline_mode):
        if use_pipeline_mode:
            # Constant block indices never re-DMA -> single buffer; deepen the tiny
            # per-step x DMA pipeline when latency- (not BW-) bound.
            const_kw = dict(pipeline_mode=pl.Buffered(1))
            x_kw = dict(pipeline_mode=pl.Buffered(x_bufs)) if x_bufs != 2 else {}
        else:
            const_kw, x_kw = {}, {}

        in_specs = [
            pl.BlockSpec((tile, in_dim), lambda i: (i, 0), **x_kw),          # x tiles
            pl.BlockSpec((in_dim, hidden), lambda i: (0, 0), **const_kw),    # W1
            pl.BlockSpec((1, hidden), lambda i: (0, 0), **const_kw),         # b1
            pl.BlockSpec((hidden, hidden), lambda i: (0, 0), **const_kw),    # W2
            pl.BlockSpec((1, hidden), lambda i: (0, 0), **const_kw),         # b2
            pl.BlockSpec((1, hidden), lambda i: (0, 0), **const_kw),         # w3 row
            pl.BlockSpec(memory_space=pltpu.MemorySpace.SMEM),               # b3 scalar
        ]
        out_specs = pl.BlockSpec((1, 1, tile), lambda i: (i, 0, 0))
        return pl.pallas_call(
            _mlp_kernel,
            out_shape=jax.ShapeDtypeStruct((num_tiles, 1, tile), jnp.float32),
            grid=(num_tiles,),
            in_specs=in_specs,
            out_specs=out_specs,
            compiler_params=pltpu.CompilerParams(
                dimension_semantics=("parallel",),
                vmem_limit_bytes=vmem_limit),
            cost_estimate=cost,
        )(x, w1c, b1f, w2c, b2f, w3r, b3s)

    try:
        out = _run(True)
    except Exception:
        # pl.Buffered pipeline_mode unsupported on this jax build; default
        # double-buffering is functionally identical.
        out = _run(False)

    # (num_tiles, 1, tile) -> (B, 1) logits, dropping any batch padding.
    return out.reshape(B_pad, 1)[:B]


# --------------------------------------------------------------------------- demo
def init_params(key, input_net_dim, hidden_dim):
    """Deterministic synthetic init (stand-in for utils.weight_init)."""
    k1, k2, k3 = jax.random.split(key, 3)

    def lin(k, fan_in, fan_out):
        w = jax.random.normal(k, (fan_in, fan_out), jnp.float32) * (1.0 / jnp.sqrt(fan_in))
        b = jnp.zeros((1, fan_out), jnp.float32)
        return w, b

    w1, b1 = lin(k1, input_net_dim, hidden_dim)
    w2, b2 = lin(k2, hidden_dim, hidden_dim)
    w3, b3 = lin(k3, hidden_dim, 1)
    return (w1, b1, w2, b2, w3, b3)


def _reference(transition, params):
    w1, b1, w2, b2, w3, b3 = params
    h1 = jnp.maximum(transition @ w1 + b1, 0.0)
    h2 = jnp.maximum(h1 @ w2 + b2, 0.0)
    return h2 @ w3 + b3


if __name__ == "__main__":
    # Small shapes consistent with the module: transition = [batch, input_net_dim]
    batch, input_net_dim, hidden_dim = 8, 24, 32

    key = jax.random.PRNGKey(0)
    kx, kp, kx2 = jax.random.split(key, 3)
    transition = jax.random.normal(kx, (batch, input_net_dim), jnp.float32)
    params = init_params(kp, input_net_dim, hidden_dim)
    ref = _reference(transition, params)

    # 1) f32 compute path with pre-prepared params: exact check.
    params_f32 = prepare_params(params, jnp.float32)
    out_f32 = jax.block_until_ready(
        discriminator_forward(transition, params_f32, compute_dtype=jnp.float32))
    assert out_f32.shape == (batch, 1)
    assert jnp.allclose(out_f32, ref, atol=1e-5, rtol=1e-5), "f32 mismatch vs reference"

    # 2) Default bf16-streaming path (f32 accumulation): loose-tolerance check.
    params_bf16 = prepare_params(params, jnp.bfloat16)
    out_bf16 = jax.block_until_ready(discriminator_forward(transition, params_bf16))
    assert out_bf16.shape == (batch, 1)
    assert jnp.allclose(out_bf16, ref, atol=1e-1, rtol=5e-2), "bf16 mismatch vs reference"

    # 3) Multi-tile + ragged batch, raw (unprepared) params path
    #    (exercises padding, even grid > 1, lane-dense output).
    batch2 = 50
    transition2 = jax.random.normal(kx2, (batch2, input_net_dim), jnp.float32)
    out2 = jax.block_until_ready(
        discriminator_forward(transition2, params, batch_tile=16,
                              compute_dtype=jnp.float32))
    assert out2.shape == (batch2, 1)
    assert jnp.allclose(out2, _reference(transition2, params), atol=1e-5, rtol=1e-5), \
        "multi-tile mismatch vs reference"

    print("KERNEL_OK")
</pallas_src>

<mosaic_0001>
module attributes {stable_mosaic.version = 11 : i64} {
  func.func @_mlp_kernel(%arg0: i32, %arg1: memref<8x24xf32, #tpu.memory_space<vmem>>, %arg2: memref<24x32xf32, #tpu.memory_space<vmem>>, %arg3: memref<1x32xf32, #tpu.memory_space<vmem>>, %arg4: memref<32x32xf32, #tpu.memory_space<vmem>>, %arg5: memref<1x32xf32, #tpu.memory_space<vmem>>, %arg6: memref<1x32xf32, #tpu.memory_space<vmem>>, %arg7: memref<1xf32, #tpu.memory_space<smem>>, %arg8: memref<1x1x8xf32, #tpu.memory_space<vmem>>) attributes {dimension_semantics = [#tpu.dimension_semantics<parallel>], iteration_bounds = array<i64: 1>, scalar_prefetch = 0 : i64, scratch_operands = 0 : i64, tpu.core_type = #tpu.core_type<tc>, window_params = [{transform_indices = @transform_0, window_bounds = array<i64: 8, 24>}, {pipeline_mode = #tpu.pipeline_mode<synchronous>, transform_indices = @transform_1, window_bounds = array<i64: 24, 32>}, {pipeline_mode = #tpu.pipeline_mode<synchronous>, transform_indices = @transform_2, window_bounds = array<i64: 1, 32>}, {pipeline_mode = #tpu.pipeline_mode<synchronous>, transform_indices = @transform_3, window_bounds = array<i64: 32, 32>}, {pipeline_mode = #tpu.pipeline_mode<synchronous>, transform_indices = @transform_4, window_bounds = array<i64: 1, 32>}, {pipeline_mode = #tpu.pipeline_mode<synchronous>, transform_indices = @transform_5, window_bounds = array<i64: 1, 32>}, {transform_indices = @transform_6, window_bounds = array<i64: 1>}, {transform_indices = @transform_7, window_bounds = array<i64: 1, 1, 8>}]} {
    %c0 = arith.constant 0 : index
    %c0_0 = arith.constant 0 : index
    %0 = vector.load %arg1[%c0, %c0_0] : memref<8x24xf32, #tpu.memory_space<vmem>>, vector<8x24xf32>
    %c0_1 = arith.constant 0 : index
    %c0_2 = arith.constant 0 : index
    %1 = vector.load %arg2[%c0_1, %c0_2] : memref<24x32xf32, #tpu.memory_space<vmem>>, vector<24x32xf32>
    %cst = arith.constant dense<0.000000e+00> : vector<8x32xf32>
    %2 = tpu.matmul %0, %1, %cst {dimension_numbers = #tpu.dot_dimension_numbers<[1], [0], [0], [1], [0, 0, 1, 1], [], []>} : vector<8x24xf32>, vector<24x32xf32>, vector<8x32xf32> -> vector<8x32xf32>
    %c0_3 = arith.constant 0 : index
    %c0_4 = arith.constant 0 : index
    %3 = vector.load %arg3[%c0_3, %c0_4] : memref<1x32xf32, #tpu.memory_space<vmem>>, vector<1x32xf32>
    %4 = vector.broadcast %3 : vector<1x32xf32> to vector<8x32xf32>
    %5 = arith.addf %2, %4 : vector<8x32xf32>
    %cst_5 = arith.constant 0.000000e+00 : f32
    %6 = vector.broadcast %cst_5 : f32 to vector<8x32xf32>
    %7 = arith.maximumf %5, %6 : vector<8x32xf32>
    %c0_6 = arith.constant 0 : index
    %c0_7 = arith.constant 0 : index
    %8 = vector.load %arg4[%c0_6, %c0_7] : memref<32x32xf32, #tpu.memory_space<vmem>>, vector<32x32xf32>
    %cst_8 = arith.constant dense<0.000000e+00> : vector<8x32xf32>
    %9 = tpu.matmul %7, %8, %cst_8 {dimension_numbers = #tpu.dot_dimension_numbers<[1], [0], [0], [1], [0, 0, 1, 1], [], []>} : vector<8x32xf32>, vector<32x32xf32>, vector<8x32xf32> -> vector<8x32xf32>
    %c0_9 = arith.constant 0 : index
    %c0_10 = arith.constant 0 : index
    %10 = vector.load %arg5[%c0_9, %c0_10] : memref<1x32xf32, #tpu.memory_space<vmem>>, vector<1x32xf32>
    %11 = vector.broadcast %10 : vector<1x32xf32> to vector<8x32xf32>
    %12 = arith.addf %9, %11 : vector<8x32xf32>
    %cst_11 = arith.constant 0.000000e+00 : f32
    %13 = vector.broadcast %cst_11 : f32 to vector<8x32xf32>
    %14 = arith.maximumf %12, %13 : vector<8x32xf32>
    %c0_12 = arith.constant 0 : index
    %c0_13 = arith.constant 0 : index
    %15 = vector.load %arg6[%c0_12, %c0_13] : memref<1x32xf32, #tpu.memory_space<vmem>>, vector<1x32xf32>
    %cst_14 = arith.constant dense<0.000000e+00> : vector<1x8xf32>
    %16 = tpu.matmul %15, %14, %cst_14 {dimension_numbers = #tpu.dot_dimension_numbers<[1], [1], [0], [0], [0, 0, 1, 0], [], []>} : vector<1x32xf32>, vector<8x32xf32>, vector<1x8xf32> -> vector<1x8xf32>
    %c0_15 = arith.constant 0 : index
    %17 = memref.load %arg7[%c0_15] : memref<1xf32, #tpu.memory_space<smem>>
    %18 = vector.broadcast %17 : f32 to vector<1x8xf32>
    %19 = arith.addf %16, %18 : vector<1x8xf32>
    %20 = vector.shape_cast %19 : vector<1x8xf32> to vector<1x1x8xf32>
    %c0_16 = arith.constant 0 : index
    %c0_17 = arith.constant 0 : index
    %c0_18 = arith.constant 0 : index
    %21 = vector.load %arg8[%c0_16, %c0_17, %c0_18] : memref<1x1x8xf32, #tpu.memory_space<vmem>>, vector<1x1x8xf32>
    tpu.vector_store %arg8[%c0_16, %c0_17, %c0_18], %20 {strides = array<i32>} : memref<1x1x8xf32, #tpu.memory_space<vmem>>, vector<1x1x8xf32>,
    return
  }
  func.func @transform_0(%arg0: i32) -> (i32, i32) {
    %c0_i32 = arith.constant 0 : i32
    %c0_i32_0 = arith.constant 0 : i32
    return %arg0, %c0_i32 : i32, i32
  }
  func.func @transform_1(%arg0: i32) -> (i32, i32) {
    %c0_i32 = arith.constant 0 : i32
    %c0_i32_0 = arith.constant 0 : i32
    %c0_i32_1 = arith.constant 0 : i32
    return %c0_i32, %c0_i32_0 : i32, i32
  }
  func.func @transform_2(%arg0: i32) -> (i32, i32) {
    %c0_i32 = arith.constant 0 : i32
    %c0_i32_0 = arith.constant 0 : i32
    %c0_i32_1 = arith.constant 0 : i32
    return %c0_i32, %c0_i32_0 : i32, i32
  }
  func.func @transform_3(%arg0: i32) -> (i32, i32) {
    %c0_i32 = arith.constant 0 : i32
    %c0_i32_0 = arith.constant 0 : i32
    %c0_i32_1 = arith.constant 0 : i32
    return %c0_i32, %c0_i32_0 : i32, i32
  }
  func.func @transform_4(%arg0: i32) -> (i32, i32) {
    %c0_i32 = arith.constant 0 : i32
    %c0_i32_0 = arith.constant 0 : i32
    %c0_i32_1 = arith.constant 0 : i32
    return %c0_i32, %c0_i32_0 : i32, i32
  }
  func.func @transform_5(%arg0: i32) -> (i32, i32) {
    %c0_i32 = arith.constant 0 : i32
    %c0_i32_0 = arith.constant 0 : i32
    %c0_i32_1 = arith.constant 0 : i32
    return %c0_i32, %c0_i32_0 : i32, i32
  }
  func.func @transform_6(%arg0: i32) -> i32 {
    %c0_i32 = arith.constant 0 : i32
    %c0_i32_0 = arith.constant 0 : i32
    return %c0_i32 : i32
  }
  func.func @transform_7(%arg0: i32) -> (i32, i32, i32) {
    %c0_i32 = arith.constant 0 : i32
    %c0_i32_0 = arith.constant 0 : i32
    %c0_i32_1 = arith.constant 0 : i32
    return %arg0, %c0_i32, %c0_i32_0 : i32, i32, i32
  }
}

</mosaic_0001>

<llo_original>
// kernel: tpu_custom_call.1
$region0: #{tpu_custom_call.1}
  #allocation0 [shape = 'u32[]', space=smem, size = 0x4, offset = 0x4, fixed_abs, tag = 'smem constant byte address 0x4 - core index']
  #allocation1 [shape = 'u32[144,128]{1,0:T(1,128)}', space=vmem, size = 0x12000, scoped, tag = 'internal scratch']
  #allocation2 [shape = 'f32[1]{0:T(128)S(6)}', space=smem, size = 0x200, scoped, tag = 'scoped memory for tpu_custom_call.1']
  %s0 = inlined_call_operand.hbm [shape: f32[8,24], index: 0, kind: input, shape index: {}]
  %s1 = inlined_call_operand.hbm [shape: f32[24,32], index: 1, kind: input, shape index: {}]
  %s2 = inlined_call_operand.vmem [shape: f32[1,32], index: 2, kind: input, shape index: {}]
  %s3 = inlined_call_operand.hbm [shape: f32[32,32], index: 3, kind: input, shape index: {}]
  %s4 = inlined_call_operand.vmem [shape: f32[1,32], index: 4, kind: input, shape index: {}]
  %s5 = inlined_call_operand.vmem [shape: f32[1,32], index: 5, kind: input, shape index: {}]
  %s6 = inlined_call_operand.<no memory space> [shape: f32[1], index: 6, kind: input, shape index: {}]
  %s7 = inlined_call_operand.hbm [shape: f32[1,1,8], index: 7, kind: output, shape index: {}]
  %s8 = sld [smem:[#allocation0]]
  $region50: #{tpu_custom_call.1} parent=0
    _
  %s10 = ssub.s32 1, %s8
  %s11 = scalar_select 0, %s10, %s8
  %12 = sst [smem:[#allocation2]] %s6
  $region1: #{tpu_custom_call.1} parent=0
    #allocation3 [shape = 'u8[4096]{0}', space=vmem, size = 0x1000, scoped, tag = 'input window, operand 0, single buffered']
    #allocation4 [shape = 's32[1]{0}', space=sflag, size = 0x4, scoped, tag = 'scoped memory for tpu_custom_call.1']
    #allocation5 [shape = 's32[1]{0}', space=sflag, size = 0x4, scoped, tag = 'scoped memory for tpu_custom_call.1']
    #allocation6 [shape = 'u8[12288]{0}', space=vmem, size = 0x3000, scoped, tag = 'input window, operand 1, single buffered']
    #allocation7 [shape = 's32[1]{0}', space=sflag, size = 0x4, scoped, tag = 'scoped memory for tpu_custom_call.1']
    #allocation8 [shape = 'u8[16384]{0}', space=vmem, size = 0x4000, scoped, tag = 'input window, operand 3, single buffered']
    #allocation9 [shape = 'u8[512]{0}', space=vmem, size = 0x400, scoped, tag = 'output window, operand 0, single buffered']
    %13 = vsyncpa [#allocation4], 0
    %14 = vsyncpa [#allocation7], 0
    %15 = vsyncpa [#allocation5], 0
    // Predicated region
    $region2: #{tpu_custom_call.1} parent=1 // pred_check
      _
    $region3: #{tpu_custom_call.1} parent=1 // pred_check_branch
      %17 = sbr.rel (0) target = $region5
    $region4: #{tpu_custom_call.1} parent=1 // pred_region
      %s19 = ssub.s32 128, 128
      %20 = vsyncadd [#allocation4], %s19
      %s22 = sshll.u32 [#allocation3], 4
      %s23 = int_to_ptr.vmem [resolvable:$true] %s22
      %25 = dma.hbm_to_vmem [thread:$0]  %s0, 128, %s23, [#allocation4]
    $region5: #{tpu_custom_call.1} parent=1 // pred_fallthru
      _
    // Predicated region
    $region6: #{tpu_custom_call.1} parent=1 // pred_check
      _
    $region7: #{tpu_custom_call.1} parent=1 // pred_check_branch
      %27 = sbr.rel (0) target = $region9
    $region8: #{tpu_custom_call.1} parent=1 // pred_region
      %s29 = ssub.s32 384, 384
      %30 = vsyncadd [#allocation7], %s29
      %s31 = sshll.u32 [#allocation6], 4
      %s32 = int_to_ptr.vmem [resolvable:$true] %s31
      %37 = dma.hbm_to_vmem [thread:$0]  %s1, 384, %s32, [#allocation7], 128, 128, 8
    $region9: #{tpu_custom_call.1} parent=1 // pred_fallthru
      _
    // Predicated region
    $region10: #{tpu_custom_call.1} parent=1 // pred_check
      _
    $region11: #{tpu_custom_call.1} parent=1 // pred_check_branch
      %39 = sbr.rel (0) target = $region13
    $region12: #{tpu_custom_call.1} parent=1 // pred_region
      _
    $region13: #{tpu_custom_call.1} parent=1 // pred_fallthru
      _
    // Predicated region
    $region14: #{tpu_custom_call.1} parent=1 // pred_check
      _
    $region15: #{tpu_custom_call.1} parent=1 // pred_check_branch
      %41 = sbr.rel (0) target = $region17
    $region16: #{tpu_custom_call.1} parent=1 // pred_region
      %s43 = ssub.s32 512, 512
      %44 = vsyncadd [#allocation7], %s43
      %s45 = sshll.u32 [#allocation8], 4
      %s46 = int_to_ptr.vmem [resolvable:$true] %s45
      %51 = dma.hbm_to_vmem [thread:$0]  %s3, 512, %s46, [#allocation7], 128, 128, 8
    $region17: #{tpu_custom_call.1} parent=1 // pred_fallthru
      _
    // Predicated region
    $region18: #{tpu_custom_call.1} parent=1 // pred_check
      _
    $region19: #{tpu_custom_call.1} parent=1 // pred_check_branch
      %53 = sbr.rel (0) target = $region21
    $region20: #{tpu_custom_call.1} parent=1 // pred_region
      _
    $region21: #{tpu_custom_call.1} parent=1 // pred_fallthru
      _
    // Predicated region
    $region22: #{tpu_custom_call.1} parent=1 // pred_check
      _
    $region23: #{tpu_custom_call.1} parent=1 // pred_check_branch
      %55 = sbr.rel (0) target = $region25
    $region24: #{tpu_custom_call.1} parent=1 // pred_region
      _
    $region25: #{tpu_custom_call.1} parent=1 // pred_fallthru
      _
    // Predicated region
    $region26: #{tpu_custom_call.1} parent=1 // pred_check
      _
    $region27: #{tpu_custom_call.1} parent=1 // pred_check_branch
      %57 = sbr.rel (0) target = $region29
    $region28: #{tpu_custom_call.1} parent=1 // pred_region
      _
    $region29: #{tpu_custom_call.1} parent=1 // pred_fallthru
      _
    // Predicated region
    $region30: #{tpu_custom_call.1} parent=1 // pred_check
      _
    $region31: #{tpu_custom_call.1} parent=1 // pred_check_branch
      %59 = sbr.rel (0) target = $region33
    $region32: #{tpu_custom_call.1} parent=1 // pred_region
      %60 = dma.done [#allocation4], 128
    $region33: #{tpu_custom_call.1} parent=1 // pred_fallthru
      _
    // Predicated region
    $region34: #{tpu_custom_call.1} parent=1 // pred_check
      _
    $region35: #{tpu_custom_call.1} parent=1 // pred_check_branch
      %62 = sbr.rel (0) target = $region37
    $region36: #{tpu_custom_call.1} parent=1 // pred_region
      %63 = dma.done [#allocation7], 384
    $region37: #{tpu_custom_call.1} parent=1 // pred_fallthru
      _
    // Predicated region
    $region38: #{tpu_custom_call.1} parent=1 // pred_check
      _
    $region39: #{tpu_custom_call.1} parent=1 // pred_check_branch
      %65 = sbr.rel (0) target = $region41
    $region40: #{tpu_custom_call.1} parent=1 // pred_region
      %66 = dma.done [#allocation7], 512
    $region41: #{tpu_custom_call.1} parent=1 // pred_fallthru
      _
    %v67 = vld [vmem:[#allocation3] sm:$0xff]
    %v68 = vld [vmem:[#allocation6] sm:$0xff]
    %v69 = vld [vmem:[#allocation6 + $0x8] sm:$0xff]
    %v70 = vld [vmem:[#allocation6 + $0x10] sm:$0xff]
    %v71 = vld [vmem:[%s2] sm:$0x1]
    %v73 = vlaneseq
    %v74 = vshrl.u32 %v73, 7
    %v75 = vsub.s32 0, %v74
    %v76 = vrot.slane %v71, %v75
    %vm78 = vcmask 195584
    %v80 = vsel %vm78, %v67, 0
    %82 = vmatprep.subr.mxu0 0.0
    %83 = vmatpush1.msra.mxu0 0.0
    %84 = vmatprep.subr.mxu0 0.0
    %85 = vmatpush1.msra.mxu0 0.0
    %86 = vmatprep.subr.mxu0 0.0
    %87 = vmatpush1.msra.mxu0 0.0
    %88 = vmatprep.subr.mxu0 0.0
    %89 = vmatpush1.msra.mxu0 0.0
    %90 = vmatprep.subr.mxu0 0.0
    %91 = vmatpush1.msra.mxu0 0.0
    %92 = vmatprep.subr.mxu0 0.0
    %93 = vmatpush1.msra.mxu0 0.0
    %94 = vmatprep.subr.mxu0 0.0
    %95 = vmatpush1.msra.mxu0 0.0
    %96 = vmatprep.subr.mxu0 0.0
    %97 = vmatpush1.msra.mxu0 0.0
    %98 = vmatprep.subr.mxu0 0.0
    %99 = vmatpush1.msra.mxu0 0.0
    %100 = vmatprep.subr.mxu0 0.0
    %101 = vmatpush1.msra.mxu0 0.0
    %102 = vmatprep.subr.mxu0 0.0
    %103 = vmatpush1.msra.mxu0 0.0
    %104 = vmatprep.subr.mxu0 0.0
    %105 = vmatpush1.msra.mxu0 0.0
    %106 = vmatprep.subr.mxu0 0.0
    %107 = vmatpush1.msra.mxu0 0.0
    %108 = vmatprep.subr.mxu0 0.0
    %109 = vmatpush1.msra.mxu0 %v70
    %110 = vmatprep.subr.mxu0 0.0
    %111 = vmatpush1.msra.mxu0 %v69
    %112 = vmatprep.subr.mxu0 0.0
    %113 = vmatpush1.msra.mxu0 %v68
    %114 = vmatprep.subr.mxu0 0.0
    %115 = vmatpush2.msra.mxu0 0.0
    %116 = vmatprep.subr.mxu0 0.0
    %117 = vmatpush2.msra.mxu0 0.0
    %118 = vmatprep.subr.mxu0 0.0
    %119 = vmatpush2.msra.mxu0 0.0
    %120 = vmatprep.subr.mxu0 0.0
    %121 = vmatpush2.msra.mxu0 0.0
    %122 = vmatprep.subr.mxu0 0.0
    %123 = vmatpush2.msra.mxu0 0.0
    %124 = vmatprep.subr.mxu0 0.0
    %125 = vmatpush2.msra.mxu0 0.0
    %126 = vmatprep.subr.mxu0 0.0
    %127 = vmatpush2.msra.mxu0 0.0
    %128 = vmatprep.subr.mxu0 0.0
    %129 = vmatpush2.msra.mxu0 0.0
    %130 = vmatprep.subr.mxu0 0.0
    %131 = vmatpush2.msra.mxu0 0.0
    %132 = vmatprep.subr.mxu0 0.0
    %133 = vmatpush2.msra.mxu0 0.0
    %134 = vmatprep.subr.mxu0 0.0
    %135 = vmatpush2.msra.mxu0 0.0
    %136 = vmatprep.subr.mxu0 0.0
    %137 = vmatpush2.msra.mxu0 0.0
    %138 = vmatprep.subr.mxu0 0.0
    %139 = vmatpush2.msra.mxu0 0.0
    %140 = vmatprep.subr.mxu0 0.0
    %141 = vmatpush2.msra.mxu0 0.0
    %142 = vmatprep.subr.mxu0 0.0
    %143 = vmatpush2.msra.mxu0 0.0
    %144 = vmatprep.subr.mxu0 0.0
    %145 = vmatpush2.msra.mxu0 0.0
    %146 = vmatprep.mubr.f32.mxu0 0.0
    %147 = vmatmul.mubr.f32.gmra.mxu0 %v80
    %v148 = vpop.f32.mrf.mxu0
    %v149 = vadd.f32 %v76, %v148
    %v150 = vpop.f32.mrf.mxu0
    %151 = vdwg.mxu0
    %v152 = vmax.f32 %v149, 0.0
    %v153 = vld [vmem:[#allocation8] sm:$0xff]
    %v154 = vld [vmem:[#allocation8 + $0x8] sm:$0xff]
    %v155 = vld [vmem:[#allocation8 + $0x10] sm:$0xff]
    %v156 = vld [vmem:[#allocation8 + $0x18] sm:$0xff]
    %v157 = vld [vmem:[%s4] sm:$0x1]
    %v159 = vlaneseq
    %v160 = vshrl.u32 %v159, 7
    %v161 = vsub.s32 0, %v160
    %v162 = vrot.slane %v157, %v161
    %vm164 = vcmask 261120
    %v166 = vsel %vm164, %v152, 0
    %168 = vmatprep.subr.mxu0 0.0
    %169 = vmatpush1.msra.mxu0 0.0
    %170 = vmatprep.subr.mxu0 0.0
    %171 = vmatpush1.msra.mxu0 0.0
    %172 = vmatprep.subr.mxu0 0.0
    %173 = vmatpush1.msra.mxu0 0.0
    %174 = vmatprep.subr.mxu0 0.0
    %175 = vmatpush1.msra.mxu0 0.0
    %176 = vmatprep.subr.mxu0 0.0
    %177 = vmatpush1.msra.mxu0 0.0
    %178 = vmatprep.subr.mxu0 0.0
    %179 = vmatpush1.msra.mxu0 0.0
    %180 = vmatprep.subr.mxu0 0.0
    %181 = vmatpush1.msra.mxu0 0.0
    %182 = vmatprep.subr.mxu0 0.0
    %183 = vmatpush1.msra.mxu0 0.0
    %184 = vmatprep.subr.mxu0 0.0
    %185 = vmatpush1.msra.mxu0 0.0
    %186 = vmatprep.subr.mxu0 0.0
    %187 = vmatpush1.msra.mxu0 0.0
    %188 = vmatprep.subr.mxu0 0.0
    %189 = vmatpush1.msra.mxu0 0.0
    %190 = vmatprep.subr.mxu0 0.0
    %191 = vmatpush1.msra.mxu0 0.0
    %192 = vmatprep.subr.mxu0 0.0
    %193 = vmatpush1.msra.mxu0 %v156
    %194 = vmatprep.subr.mxu0 0.0
    %195 = vmatpush1.msra.mxu0 %v155
    %196 = vmatprep.subr.mxu0 0.0
    %197 = vmatpush1.msra.mxu0 %v154
    %198 = vmatprep.subr.mxu0 0.0
    %199 = vmatpush1.msra.mxu0 %v153
    %200 = vmatprep.subr.mxu0 0.0
    %201 = vmatpush2.msra.mxu0 0.0
    %202 = vmatprep.subr.mxu0 0.0
    %203 = vmatpush2.msra.mxu0 0.0
    %204 = vmatprep.subr.mxu0 0.0
    %205 = vmatpush2.msra.mxu0 0.0
    %206 = vmatprep.subr.mxu0 0.0
    %207 = vmatpush2.msra.mxu0 0.0
    %208 = vmatprep.subr.mxu0 0.0
    %209 = vmatpush2.msra.mxu0 0.0
    %210 = vmatprep.subr.mxu0 0.0
    %211 = vmatpush2.msra.mxu0 0.0
    %212 = vmatprep.subr.mxu0 0.0
    %213 = vmatpush2.msra.mxu0 0.0
    %214 = vmatprep.subr.mxu0 0.0
    %215 = vmatpush2.msra.mxu0 0.0
    %216 = vmatprep.subr.mxu0 0.0
    %217 = vmatpush2.msra.mxu0 0.0
    %218 = vmatprep.subr.mxu0 0.0
    %219 = vmatpush2.msra.mxu0 0.0
    %220 = vmatprep.subr.mxu0 0.0
    %221 = vmatpush2.msra.mxu0 0.0
    %222 = vmatprep.subr.mxu0 0.0
    %223 = vmatpush2.msra.mxu0 0.0
    %224 = vmatprep.subr.mxu0 0.0
    %225 = vmatpush2.msra.mxu0 0.0
    %226 = vmatprep.subr.mxu0 0.0
    %227 = vmatpush2.msra.mxu0 0.0
    %228 = vmatprep.subr.mxu0 0.0
    %229 = vmatpush2.msra.mxu0 0.0
    %230 = vmatprep.subr.mxu0 0.0
    %231 = vmatpush2.msra.mxu0 0.0
    %232 = vmatprep.mubr.f32.mxu0 0.0
    %233 = vmatmul.mubr.f32.gmra.mxu0 %v166
    %v234 = vpop.f32.mrf.mxu0
    %v235 = vadd.f32 %v162, %v234
    %v236 = vpop.f32.mrf.mxu0
    %237 = vdwg.mxu0
    %v238 = vmax.f32 %v235, 0.0
    %v239 = vld [vmem:[%s5] sm:$0x1]
    %s240 = sld [smem:[#allocation2]]
    %v241 = vstv %s240
    %v243 = vsel %vm164, %v239, 0
    %v246 = vsel %vm164, %v238, 0
    %248 = vmatprep.subr.mxu0 0.0
    %249 = vmatpush1.xpose.msra.mxu0 0.0
    %250 = vmatprep.subr.mxu0 0.0
    %251 = vmatpush1.xpose.msra.mxu0 0.0
    %252 = vmatprep.subr.mxu0 0.0
    %253 = vmatpush1.xpose.msra.mxu0 0.0
    %254 = vmatprep.subr.mxu0 0.0
    %255 = vmatpush1.xpose.msra.mxu0 0.0
    %256 = vmatprep.subr.mxu0 0.0
    %257 = vmatpush1.xpose.msra.mxu0 0.0
    %258 = vmatprep.subr.mxu0 0.0
    %259 = vmatpush1.xpose.msra.mxu0 0.0
    %260 = vmatprep.subr.mxu0 0.0
    %261 = vmatpush1.xpose.msra.mxu0 0.0
    %262 = vmatprep.subr.mxu0 0.0
    %263 = vmatpush1.xpose.msra.mxu0 0.0
    %264 = vmatprep.subr.mxu0 0.0
    %265 = vmatpush1.xpose.msra.mxu0 0.0
    %266 = vmatprep.subr.mxu0 0.0
    %267 = vmatpush1.xpose.msra.mxu0 0.0
    %268 = vmatprep.subr.mxu0 0.0
    %269 = vmatpush1.xpose.msra.mxu0 0.0
    %270 = vmatprep.subr.mxu0 0.0
    %271 = vmatpush1.xpose.msra.mxu0 0.0
    %272 = vmatprep.subr.mxu0 0.0
    %273 = vmatpush1.xpose.msra.mxu0 0.0
    %274 = vmatprep.subr.mxu0 0.0
    %275 = vmatpush1.xpose.msra.mxu0 0.0
    %276 = vmatprep.subr.mxu0 0.0
    %277 = vmatpush1.xpose.msra.mxu0 0.0
    %278 = vmatprep.subr.mxu0 0.0
    %279 = vmatpush1.xpose.msra.mxu0 %v246
    %280 = vmatprep.subr.mxu0 0.0
    %281 = vmatpush2.xpose.msra.mxu0 0.0
    %282 = vmatprep.subr.mxu0 0.0
    %283 = vmatpush2.xpose.msra.mxu0 0.0
    %284 = vmatprep.subr.mxu0 0.0
    %285 = vmatpush2.xpose.msra.mxu0 0.0
    %286 = vmatprep.subr.mxu0 0.0
    %287 = vmatpush2.xpose.msra.mxu0 0.0
    %288 = vmatprep.subr.mxu0 0.0
    %289 = vmatpush2.xpose.msra.mxu0 0.0
    %290 = vmatprep.subr.mxu0 0.0
    %291 = vmatpush2.xpose.msra.mxu0 0.0
    %292 = vmatprep.subr.mxu0 0.0
    %293 = vmatpush2.xpose.msra.mxu0 0.0
    %294 = vmatprep.subr.mxu0 0.0
    %295 = vmatpush2.xpose.msra.mxu0 0.0
    %296 = vmatprep.subr.mxu0 0.0
    %297 = vmatpush2.xpose.msra.mxu0 0.0
    %298 = vmatprep.subr.mxu0 0.0
    %299 = vmatpush2.xpose.msra.mxu0 0.0
    %300 = vmatprep.subr.mxu0 0.0
    %301 = vmatpush2.xpose.msra.mxu0 0.0
    %302 = vmatprep.subr.mxu0 0.0
    %303 = vmatpush2.xpose.msra.mxu0 0.0
    %304 = vmatprep.subr.mxu0 0.0
    %305 = vmatpush2.xpose.msra.mxu0 0.0
    %306 = vmatprep.subr.mxu0 0.0
    %307 = vmatpush2.xpose.msra.mxu0 0.0
    %308 = vmatprep.subr.mxu0 0.0
    %309 = vmatpush2.xpose.msra.mxu0 0.0
    %310 = vmatprep.subr.mxu0 0.0
    %311 = vmatpush2.xpose.msra.mxu0 0.0
    %312 = vmatprep.mubr.f32.mxu0 0.0
    %313 = vmatmul.mubr.f32.gmra.mxu0 %v243
    %v314 = vpop.f32.mrf.mxu0
    %v315 = vadd.f32 %v241, %v314
    %v316 = vpop.f32.mrf.mxu0
    %317 = vdwg.mxu0
    %vm318 = vcmask 57344
    %319 = vst.msk [vmem:[#allocation9] sm:$0x1] %vm318, %v315
    // Predicated region
    $region42: #{tpu_custom_call.1} parent=1 // pred_check
      _
    $region43: #{tpu_custom_call.1} parent=1 // pred_check_branch
      %321 = sbr.rel (0) target = $region45
    $region44: #{tpu_custom_call.1} parent=1 // pred_region
      %s323 = ssub.s32 16, 16
      %324 = vsyncadd [#allocation5], %s323
      %s326 = sshll.u32 [#allocation9], 4
      %s327 = int_to_ptr.vmem [resolvable:$true] %s326
      %329 = dma.vmem_to_hbm [thread:$0]  %s327, 16, %s7, [#allocation5]
    $region45: #{tpu_custom_call.1} parent=1 // pred_fallthru
      _
    // Predicated region
    $region46: #{tpu_custom_call.1} parent=1 // pred_check
      _
    $region47: #{tpu_custom_call.1} parent=1 // pred_check_branch
      %331 = sbr.rel (0) target = $region49
    $region48: #{tpu_custom_call.1} parent=1 // pred_region
      %332 = dma.done [#allocation5], 16
    $region49: #{tpu_custom_call.1} parent=1 // pred_fallthru
      _
    %333 = vsyncpa [#allocation4], 1
    %334 = vsyncpa [#allocation7], 1
    %335 = vsyncpa [#allocation5], 1

</llo_original>
